<compile_context>
chip_gen: v7x
topology: tpu7x:2x2x1
jax: 0.10.0
libtpu: 0.0.40
codegen_flags: <defaults>
</compile_context>

<pallas_src>
import jax
import jax.numpy as jnp
from jax.experimental import pallas as pl
from jax.experimental.pallas import tpu as pltpu

_BN_EPS = 1e-5


def _make_mlp_kernel(out_size):
    """Kernel factory closing over the true (unpadded) number of classes."""

    def _mlp_kernel(x_ref, w1_ref, b1_ref, w2_ref, b2_ref, w3_ref, b3_ref,
                    o_ref):
        # x tile arrives already in bf16; MXU accumulates in f32.
        x = x_ref[...]

        # fc1 -> relu    (bn1/dropout1 already folded into w2/b2)
        h = jnp.dot(x, w1_ref[...],
                    preferred_element_type=jnp.float32) + b1_ref[...]
        h = jnp.maximum(h, 0.0)

        # fc2 -> relu    (bn2/dropout2 already folded into w3/b3)
        h = jnp.dot(h.astype(jnp.bfloat16), w2_ref[...],
                    preferred_element_type=jnp.float32) + b2_ref[...]
        h = jnp.maximum(h, 0.0)

        # fc3 -> softmax over dim=1.  Padded lanes carry -1e30 bias so their
        # exp() is exactly 0; denom therefore covers only the real classes.
        logits = jnp.dot(h.astype(jnp.bfloat16), w3_ref[...],
                         preferred_element_type=jnp.float32) + b3_ref[...]
        m = jnp.max(logits, axis=1, keepdims=True)
        e = jnp.exp(logits - m)
        denom = jnp.sum(e, axis=1, keepdims=True)
        # Store only the true classes (narrow f32 output block).
        o_ref[...] = e[:, :out_size] / denom

    return _mlp_kernel


def prepare_params(params):
    """One-time parameter transform: fold eval-mode BN into the next layer's
    weights/biases, cast matmul operands to bf16, pad fc3 output dim to 128."""
    f32 = jnp.float32

    def bn_fold(g, b, mean, var):
        scale = g / jnp.sqrt(var + _BN_EPS)
        shift = b - mean * scale
        return scale, shift

    s1, t1 = bn_fold(params["bn1_g"], params["bn1_b"],
                     params["bn1_mean"], params["bn1_var"])
    s2, t2 = bn_fold(params["bn2_g"], params["bn2_b"],
                     params["bn2_mean"], params["bn2_var"])

    w1 = params["w1"]
    b1 = params["b1"]
    # (s1*h + t1) @ w2 + b2 == h @ (s1[:,None]*w2) + (t1 @ w2 + b2)
    w2 = s1[:, None] * params["w2"]
    b2 = params["b2"] + t1 @ params["w2"]
    # (s2*h + t2) @ w3 + b3 == h @ (s2[:,None]*w3) + (t2 @ w3 + b3)
    w3 = s2[:, None] * params["w3"]
    b3 = params["b3"] + t2 @ params["w3"]

    # Pad fc3 output features to a multiple of 128 for a lane-dense MXU
    # output; padded columns are exactly 0 (exact in bf16) and padded bias
    # lanes are -1e30 (kept in f32) so they vanish under softmax.
    out_size = w3.shape[1]
    out_pad = 128 * pl.cdiv(out_size, 128)
    w3p = jnp.zeros((w3.shape[0], out_pad), f32).at[:, :out_size].set(w3)
    b3p = jnp.full((out_pad,), -1e30, f32).at[:out_size].set(b3)

    return {
        "w1": w1.astype(jnp.bfloat16),
        "b1": b1.astype(f32).reshape(1, -1),
        "w2": w2.astype(jnp.bfloat16),
        "b2": b2.astype(f32).reshape(1, -1),
        "w3": w3p.astype(jnp.bfloat16),
        "b3": b3p.reshape(1, -1),
        "out_size": int(out_size),
    }


def _choose_tb(B, tb):
    """Batch-tile selection (multiple of 16 for bf16 sublane packing)."""
    if tb is not None:
        return max(16, 16 * pl.cdiv(tb, 16))
    if B <= 512:
        # Small problem: one grid step -> no per-step pipeline overhead.
        return 16 * pl.cdiv(B, 16)
    # Large batch: multiple of 256 fills the 256x256 MXU M dimension and
    # keeps grid length >= 2 so v7x's two TensorCores both get work.
    return 512


def neural_network_forward(x, folded, *, tb=None):
    """x: (B, input_size) float32.  folded: output of prepare_params."""
    B, d_in = x.shape
    hidden = folded["w2"].shape[0]
    out_pad = folded["w3"].shape[1]
    out_size = folded["out_size"]

    tb = _choose_tb(B, tb)
    b_pad = tb * pl.cdiv(B, tb)

    # bf16 input tile: halves the dominant per-step HBM read.
    xb = x.astype(jnp.bfloat16)
    if b_pad != B:
        xb = jnp.pad(xb, ((0, b_pad - B), (0, 0)))

    out = pl.pallas_call(
        _make_mlp_kernel(out_size),
        out_shape=jax.ShapeDtypeStruct((b_pad, out_size), jnp.float32),
        grid_spec=pltpu.PrefetchScalarGridSpec(
            num_scalar_prefetch=0,
            grid=(b_pad // tb,),
            in_specs=[
                pl.BlockSpec((tb, d_in), lambda i: (i, 0)),        # x tile (bf16)
                pl.BlockSpec((d_in, hidden), lambda i: (0, 0)),    # w1 (resident)
                pl.BlockSpec((1, hidden), lambda i: (0, 0)),       # b1
                pl.BlockSpec((hidden, hidden), lambda i: (0, 0)),  # w2 (resident)
                pl.BlockSpec((1, hidden), lambda i: (0, 0)),       # b2
                pl.BlockSpec((hidden, out_pad), lambda i: (0, 0)), # w3 (resident)
                pl.BlockSpec((1, out_pad), lambda i: (0, 0)),      # b3
            ],
            out_specs=pl.BlockSpec((tb, out_size), lambda i: (i, 0)),
        ),
        compiler_params=pltpu.CompilerParams(
            dimension_semantics=("parallel",)),
    )(xb, folded["w1"], folded["b1"], folded["w2"], folded["b2"],
      folded["w3"], folded["b3"])

    return out if b_pad == B else out[:B]


def init_params(key, input_size, hidden_size, output_size):
    """Deterministic synthetic parameters (PyTorch-Linear-like init scale),
    with non-trivial BN running statistics to exercise the eval-mode fold."""
    ks = jax.random.split(key, 14)

    def linear(kw, kb, fan_in, fan_out):
        bound = 1.0 / jnp.sqrt(fan_in)
        w = jax.random.uniform(kw, (fan_in, fan_out), jnp.float32, -bound, bound)
        b = jax.random.uniform(kb, (fan_out,), jnp.float32, -bound, bound)
        return w, b

    def bn(kg, kb, km, kv, n):
        return {
            "g": jax.random.uniform(kg, (n,), jnp.float32, 0.5, 1.5),
            "b": 0.1 * jax.random.normal(kb, (n,), jnp.float32),
            "mean": 0.1 * jax.random.normal(km, (n,), jnp.float32),
            "var": jax.random.uniform(kv, (n,), jnp.float32, 0.5, 1.5),
        }

    w1, b1 = linear(ks[0], ks[1], input_size, hidden_size)
    w2, b2 = linear(ks[2], ks[3], hidden_size, hidden_size)
    w3, b3 = linear(ks[4], ks[5], hidden_size, output_size)
    bn1 = bn(ks[6], ks[7], ks[8], ks[9], hidden_size)
    bn2 = bn(ks[10], ks[11], ks[12], ks[13], hidden_size)

    return {
        "w1": w1, "b1": b1,
        "bn1_g": bn1["g"], "bn1_b": bn1["b"],
        "bn1_mean": bn1["mean"], "bn1_var": bn1["var"],
        "w2": w2, "b2": b2,
        "bn2_g": bn2["g"], "bn2_b": bn2["b"],
        "bn2_mean": bn2["mean"], "bn2_var": bn2["var"],
        "w3": w3, "b3": b3,
    }


def reference_forward(x, params):
    """Pure-JAX f32 eval-mode reference (matches the PyTorch module)."""
    def bn(h, g, b, mean, var):
        return (h - mean) / jnp.sqrt(var + _BN_EPS) * g + b

    h = jnp.maximum(x @ params["w1"] + params["b1"], 0.0)
    h = bn(h, params["bn1_g"], params["bn1_b"], params["bn1_mean"], params["bn1_var"])
    h = jnp.maximum(h @ params["w2"] + params["b2"], 0.0)
    h = bn(h, params["bn2_g"], params["bn2_b"], params["bn2_mean"], params["bn2_var"])
    logits = h @ params["w3"] + params["b3"]
    return jax.nn.softmax(logits, axis=1)


if __name__ == "__main__":
    # Lane-aligned model dims; small overall problem size.
    input_size, hidden_size, output_size = 128, 128, 16
    batch = 64

    key = jax.random.PRNGKey(0)
    k_x, k_p = jax.random.split(key)
    x = jax.random.normal(k_x, (batch, input_size), jnp.float32)
    params = init_params(k_p, input_size, hidden_size, output_size)

    folded = prepare_params(params)         # one-time BN fold / bf16 / padding
    out = neural_network_forward(x, folded) # tb auto -> 64, grid=(1,)
    out = jax.block_until_ready(out)

    # sanity: shape, softmax rows sum to 1, close to f32 reference
    assert out.shape == (batch, output_size)
    assert bool(jnp.allclose(jnp.sum(out, axis=1), 1.0, atol=1e-4))
    ref = reference_forward(x, params)
    assert bool(jnp.allclose(out, ref, atol=2e-2)), float(jnp.max(jnp.abs(out - ref)))
    print("KERNEL_OK")
</pallas_src>

<mosaic_0001>
module attributes {stable_mosaic.version = 11 : i64} {
  func.func @_mlp_kernel(%arg0: i32, %arg1: memref<64x128xbf16, #tpu.memory_space<vmem>>, %arg2: memref<128x128xbf16, #tpu.memory_space<vmem>>, %arg3: memref<1x128xf32, #tpu.memory_space<vmem>>, %arg4: memref<128x128xbf16, #tpu.memory_space<vmem>>, %arg5: memref<1x128xf32, #tpu.memory_space<vmem>>, %arg6: memref<128x128xbf16, #tpu.memory_space<vmem>>, %arg7: memref<1x128xf32, #tpu.memory_space<vmem>>, %arg8: memref<64x16xf32, #tpu.memory_space<vmem>>) attributes {dimension_semantics = [#tpu.dimension_semantics<parallel>], iteration_bounds = array<i64: 1>, scalar_prefetch = 0 : i64, scratch_operands = 0 : i64, tpu.core_type = #tpu.core_type<tc>, window_params = [{transform_indices = @transform_0, window_bounds = array<i64: 64, 128>}, {pipeline_mode = #tpu.pipeline_mode<synchronous>, transform_indices = @transform_1, window_bounds = array<i64: 128, 128>}, {pipeline_mode = #tpu.pipeline_mode<synchronous>, transform_indices = @transform_2, window_bounds = array<i64: 1, 128>}, {pipeline_mode = #tpu.pipeline_mode<synchronous>, transform_indices = @transform_3, window_bounds = array<i64: 128, 128>}, {pipeline_mode = #tpu.pipeline_mode<synchronous>, transform_indices = @transform_4, window_bounds = array<i64: 1, 128>}, {pipeline_mode = #tpu.pipeline_mode<synchronous>, transform_indices = @transform_5, window_bounds = array<i64: 128, 128>}, {pipeline_mode = #tpu.pipeline_mode<synchronous>, transform_indices = @transform_6, window_bounds = array<i64: 1, 128>}, {transform_indices = @transform_7, window_bounds = array<i64: 64, 16>}]} {
    %c0 = arith.constant 0 : index
    %c0_0 = arith.constant 0 : index
    %0 = vector.load %arg1[%c0, %c0_0] : memref<64x128xbf16, #tpu.memory_space<vmem>>, vector<64x128xbf16>
    %c0_1 = arith.constant 0 : index
    %c0_2 = arith.constant 0 : index
    %1 = vector.load %arg2[%c0_1, %c0_2] : memref<128x128xbf16, #tpu.memory_space<vmem>>, vector<128x128xbf16>
    %cst = arith.constant dense<0.000000e+00> : vector<64x128xf32>
    %2 = tpu.matmul %0, %1, %cst {dimension_numbers = #tpu.dot_dimension_numbers<[1], [0], [0], [1], [0, 0, 1, 1], [], []>} : vector<64x128xbf16>, vector<128x128xbf16>, vector<64x128xf32> -> vector<64x128xf32>
    %c0_3 = arith.constant 0 : index
    %c0_4 = arith.constant 0 : index
    %3 = vector.load %arg3[%c0_3, %c0_4] : memref<1x128xf32, #tpu.memory_space<vmem>>, vector<1x128xf32>
    %4 = vector.broadcast %3 : vector<1x128xf32> to vector<64x128xf32>
    %5 = arith.addf %2, %4 : vector<64x128xf32>
    %cst_5 = arith.constant 0.000000e+00 : f32
    %6 = vector.broadcast %cst_5 : f32 to vector<64x128xf32>
    %7 = arith.maximumf %5, %6 : vector<64x128xf32>
    %8 = arith.truncf %7 : vector<64x128xf32> to vector<64x128xbf16>
    %c0_6 = arith.constant 0 : index
    %c0_7 = arith.constant 0 : index
    %9 = vector.load %arg4[%c0_6, %c0_7] : memref<128x128xbf16, #tpu.memory_space<vmem>>, vector<128x128xbf16>
    %cst_8 = arith.constant dense<0.000000e+00> : vector<64x128xf32>
    %10 = tpu.matmul %8, %9, %cst_8 {dimension_numbers = #tpu.dot_dimension_numbers<[1], [0], [0], [1], [0, 0, 1, 1], [], []>} : vector<64x128xbf16>, vector<128x128xbf16>, vector<64x128xf32> -> vector<64x128xf32>
    %c0_9 = arith.constant 0 : index
    %c0_10 = arith.constant 0 : index
    %11 = vector.load %arg5[%c0_9, %c0_10] : memref<1x128xf32, #tpu.memory_space<vmem>>, vector<1x128xf32>
    %12 = vector.broadcast %11 : vector<1x128xf32> to vector<64x128xf32>
    %13 = arith.addf %10, %12 : vector<64x128xf32>
    %cst_11 = arith.constant 0.000000e+00 : f32
    %14 = vector.broadcast %cst_11 : f32 to vector<64x128xf32>
    %15 = arith.maximumf %13, %14 : vector<64x128xf32>
    %16 = arith.truncf %15 : vector<64x128xf32> to vector<64x128xbf16>
    %c0_12 = arith.constant 0 : index
    %c0_13 = arith.constant 0 : index
    %17 = vector.load %arg6[%c0_12, %c0_13] : memref<128x128xbf16, #tpu.memory_space<vmem>>, vector<128x128xbf16>
    %cst_14 = arith.constant dense<0.000000e+00> : vector<64x128xf32>
    %18 = tpu.matmul %16, %17, %cst_14 {dimension_numbers = #tpu.dot_dimension_numbers<[1], [0], [0], [1], [0, 0, 1, 1], [], []>} : vector<64x128xbf16>, vector<128x128xbf16>, vector<64x128xf32> -> vector<64x128xf32>
    %c0_15 = arith.constant 0 : index
    %c0_16 = arith.constant 0 : index
    %19 = vector.load %arg7[%c0_15, %c0_16] : memref<1x128xf32, #tpu.memory_space<vmem>>, vector<1x128xf32>
    %20 = vector.broadcast %19 : vector<1x128xf32> to vector<64x128xf32>
    %21 = arith.addf %18, %20 : vector<64x128xf32>
    %cst_17 = arith.constant dense<0xFF800000> : vector<64xf32>
    %22 = vector.multi_reduction <maximumf>, %21, %cst_17 [1] : vector<64x128xf32> to vector<64xf32>
    %23 = vector.shape_cast %22 : vector<64xf32> to vector<64x1xf32>
    %24 = vector.broadcast %23 : vector<64x1xf32> to vector<64x128xf32>
    %25 = arith.subf %21, %24 : vector<64x128xf32>
    %26 = math.exp %25 : vector<64x128xf32>
    %cst_18 = arith.constant dense<0.000000e+00> : vector<64xf32>
    %27 = vector.multi_reduction <add>, %26, %cst_18 [1] : vector<64x128xf32> to vector<64xf32>
    %28 = vector.shape_cast %27 : vector<64xf32> to vector<64x1xf32>
    %29 = vector.extract_strided_slice %26 {offsets = [0, 0], sizes = [64, 16], strides = [1, 1]} : vector<64x128xf32> to vector<64x16xf32>
    %30 = vector.broadcast %28 : vector<64x1xf32> to vector<64x16xf32>
    %31 = arith.divf %29, %30 : vector<64x16xf32>
    %c0_19 = arith.constant 0 : index
    %c0_20 = arith.constant 0 : index
    %32 = vector.load %arg8[%c0_19, %c0_20] : memref<64x16xf32, #tpu.memory_space<vmem>>, vector<64x16xf32>
    tpu.vector_store %arg8[%c0_19, %c0_20], %31 {strides = array<i32>} : memref<64x16xf32, #tpu.memory_space<vmem>>, vector<64x16xf32>,
    return
  }
  func.func @transform_0(%arg0: i32) -> (i32, i32) {
    %c0_i32 = arith.constant 0 : i32
    %c0_i32_0 = arith.constant 0 : i32
    return %arg0, %c0_i32 : i32, i32
  }
  func.func @transform_1(%arg0: i32) -> (i32, i32) {
    %c0_i32 = arith.constant 0 : i32
    %c0_i32_0 = arith.constant 0 : i32
    %c0_i32_1 = arith.constant 0 : i32
    return %c0_i32, %c0_i32_0 : i32, i32
  }
  func.func @transform_2(%arg0: i32) -> (i32, i32) {
    %c0_i32 = arith.constant 0 : i32
    %c0_i32_0 = arith.constant 0 : i32
    %c0_i32_1 = arith.constant 0 : i32
    return %c0_i32, %c0_i32_0 : i32, i32
  }
  func.func @transform_3(%arg0: i32) -> (i32, i32) {
    %c0_i32 = arith.constant 0 : i32
    %c0_i32_0 = arith.constant 0 : i32
    %c0_i32_1 = arith.constant 0 : i32
    return %c0_i32, %c0_i32_0 : i32, i32
  }
  func.func @transform_4(%arg0: i32) -> (i32, i32) {
    %c0_i32 = arith.constant 0 : i32
    %c0_i32_0 = arith.constant 0 : i32
    %c0_i32_1 = arith.constant 0 : i32
    return %c0_i32, %c0_i32_0 : i32, i32
  }
  func.func @transform_5(%arg0: i32) -> (i32, i32) {
    %c0_i32 = arith.constant 0 : i32
    %c0_i32_0 = arith.constant 0 : i32
    %c0_i32_1 = arith.constant 0 : i32
    return %c0_i32, %c0_i32_0 : i32, i32
  }
  func.func @transform_6(%arg0: i32) -> (i32, i32) {
    %c0_i32 = arith.constant 0 : i32
    %c0_i32_0 = arith.constant 0 : i32
    %c0_i32_1 = arith.constant 0 : i32
    return %c0_i32, %c0_i32_0 : i32, i32
  }
  func.func @transform_7(%arg0: i32) -> (i32, i32) {
    %c0_i32 = arith.constant 0 : i32
    %c0_i32_0 = arith.constant 0 : i32
    return %arg0, %c0_i32 : i32, i32
  }
}

</mosaic_0001>

<llo_original>
// kernel: tpu_custom_call.1
$region0: #{tpu_custom_call.1}
  #allocation0 [shape = 'u32[]', space=smem, size = 0x4, offset = 0x4, fixed_abs, tag = 'smem constant byte address 0x4 - core index']
  #allocation1 [shape = 'u32[144,128]{1,0:T(1,128)}', space=vmem, size = 0x12000, scoped, tag = 'internal scratch']
  %s0 = inlined_call_operand.hbm [shape: bf16[64,128], index: 0, kind: input, shape index: {}]
  %s1 = inlined_call_operand.hbm [shape: bf16[128,128], index: 1, kind: input, shape index: {}]
  %s2 = inlined_call_operand.vmem [shape: f32[1,128], index: 2, kind: input, shape index: {}]
  %s3 = inlined_call_operand.hbm [shape: bf16[128,128], index: 3, kind: input, shape index: {}]
  %s4 = inlined_call_operand.vmem [shape: f32[1,128], index: 4, kind: input, shape index: {}]
  %s5 = inlined_call_operand.hbm [shape: bf16[128,128], index: 5, kind: input, shape index: {}]
  %s6 = inlined_call_operand.vmem [shape: f32[1,128], index: 6, kind: input, shape index: {}]
  %s7 = inlined_call_operand.vmem [shape: f32[64,16], index: 7, kind: output, shape index: {}]
  %s8 = sld [smem:[#allocation0]]
  $region54: #{tpu_custom_call.1} parent=0
    _
  %s10 = ssub.s32 1, %s8
  %s11 = scalar_select 0, %s10, %s8
  $region1: #{tpu_custom_call.1} parent=0
    #allocation2 [shape = 'u8[16384]{0}', space=vmem, size = 0x4000, scoped, tag = 'input window, operand 0, single buffered']
    #allocation3 [shape = 's32[1]{0}', space=sflag, size = 0x4, scoped, tag = 'scoped memory for tpu_custom_call.1']
    #allocation4 [shape = 'u8[32768]{0}', space=vmem, size = 0x8000, scoped, tag = 'input window, operand 1, single buffered']
    #allocation5 [shape = 's32[1]{0}', space=sflag, size = 0x4, scoped, tag = 'scoped memory for tpu_custom_call.1']
    #allocation6 [shape = 'u8[32768]{0}', space=vmem, size = 0x8000, scoped, tag = 'input window, operand 3, single buffered']
    #allocation7 [shape = 'u8[32768]{0}', space=vmem, size = 0x8000, scoped, tag = 'input window, operand 5, single buffered']
    #allocation8 [shape = 's32[1]{0}', space=sflag, size = 0x4, scoped, tag = 'scoped memory for tpu_custom_call.1']
    %12 = vsyncpa [#allocation3], 0
    %13 = vsyncpa [#allocation5], 0
    %14 = vsyncpa [#allocation8], 0
    // Predicated region
    $region2: #{tpu_custom_call.1} parent=1 // pred_check
      _
    $region3: #{tpu_custom_call.1} parent=1 // pred_check_branch
      %16 = sbr.rel (0) target = $region5
    $region4: #{tpu_custom_call.1} parent=1 // pred_region
      %s18 = ssub.s32 512, 512
      %19 = vsyncadd [#allocation3], %s18
      %s20 = sshll.u32 [#allocation2], 4
      %s21 = int_to_ptr.vmem [resolvable:$true] %s20
      %26 = dma.hbm_to_vmem [thread:$0]  %s0, 512, %s21, [#allocation3], 64, 64, 4
    $region5: #{tpu_custom_call.1} parent=1 // pred_fallthru
      _
    // Predicated region
    $region6: #{tpu_custom_call.1} parent=1 // pred_check
      _
    $region7: #{tpu_custom_call.1} parent=1 // pred_check_branch
      %28 = sbr.rel (0) target = $region9
    $region8: #{tpu_custom_call.1} parent=1 // pred_region
      %s30 = ssub.s32 1024, 1024
      %31 = vsyncadd [#allocation5], %s30
      %s32 = sshll.u32 [#allocation4], 4
      %s33 = int_to_ptr.vmem [resolvable:$true] %s32
      %38 = dma.hbm_to_vmem [thread:$0]  %s1, 1024, %s33, [#allocation5], 64, 64, 4
    $region9: #{tpu_custom_call.1} parent=1 // pred_fallthru
      _
    // Predicated region
    $region10: #{tpu_custom_call.1} parent=1 // pred_check
      _
    $region11: #{tpu_custom_call.1} parent=1 // pred_check_branch
      %40 = sbr.rel (0) target = $region13
    $region12: #{tpu_custom_call.1} parent=1 // pred_region
      _
    $region13: #{tpu_custom_call.1} parent=1 // pred_fallthru
      _
    // Predicated region
    $region14: #{tpu_custom_call.1} parent=1 // pred_check
      _
    $region15: #{tpu_custom_call.1} parent=1 // pred_check_branch
      %42 = sbr.rel (0) target = $region17
    $region16: #{tpu_custom_call.1} parent=1 // pred_region
      %s44 = ssub.s32 1024, 1024
      %45 = vsyncadd [#allocation5], %s44
      %s46 = sshll.u32 [#allocation6], 4
      %s47 = int_to_ptr.vmem [resolvable:$true] %s46
      %52 = dma.hbm_to_vmem [thread:$0]  %s3, 1024, %s47, [#allocation5], 64, 64, 4
    $region17: #{tpu_custom_call.1} parent=1 // pred_fallthru
      _
    // Predicated region
    $region18: #{tpu_custom_call.1} parent=1 // pred_check
      _
    $region19: #{tpu_custom_call.1} parent=1 // pred_check_branch
      %54 = sbr.rel (0) target = $region21
    $region20: #{tpu_custom_call.1} parent=1 // pred_region
      _
    $region21: #{tpu_custom_call.1} parent=1 // pred_fallthru
      _
    // Predicated region
    $region22: #{tpu_custom_call.1} parent=1 // pred_check
      _
    $region23: #{tpu_custom_call.1} parent=1 // pred_check_branch
      %56 = sbr.rel (0) target = $region25
    $region24: #{tpu_custom_call.1} parent=1 // pred_region
      %s58 = ssub.s32 1024, 1024
      %59 = vsyncadd [#allocation8], %s58
      %s60 = sshll.u32 [#allocation7], 4
      %s61 = int_to_ptr.vmem [resolvable:$true] %s60
      %66 = dma.hbm_to_vmem [thread:$0]  %s5, 1024, %s61, [#allocation8], 64, 64, 4
    $region25: #{tpu_custom_call.1} parent=1 // pred_fallthru
      _
    // Predicated region
    $region26: #{tpu_custom_call.1} parent=1 // pred_check
      _
    $region27: #{tpu_custom_call.1} parent=1 // pred_check_branch
      %68 = sbr.rel (0) target = $region29
    $region28: #{tpu_custom_call.1} parent=1 // pred_region
      _
    $region29: #{tpu_custom_call.1} parent=1 // pred_fallthru
      _
    // Predicated region
    $region30: #{tpu_custom_call.1} parent=1 // pred_check
      _
    $region31: #{tpu_custom_call.1} parent=1 // pred_check_branch
      %70 = sbr.rel (0) target = $region33
    $region32: #{tpu_custom_call.1} parent=1 // pred_region
      %71 = dma.done [#allocation3], 512
    $region33: #{tpu_custom_call.1} parent=1 // pred_fallthru
      _
    // Predicated region
    $region34: #{tpu_custom_call.1} parent=1 // pred_check
      _
    $region35: #{tpu_custom_call.1} parent=1 // pred_check_branch
      %73 = sbr.rel (0) target = $region37
    $region36: #{tpu_custom_call.1} parent=1 // pred_region
      %74 = dma.done [#allocation5], 1024
    $region37: #{tpu_custom_call.1} parent=1 // pred_fallthru
      _
    // Predicated region
    $region38: #{tpu_custom_call.1} parent=1 // pred_check
      _
    $region39: #{tpu_custom_call.1} parent=1 // pred_check_branch
      %76 = sbr.rel (0) target = $region41
    $region40: #{tpu_custom_call.1} parent=1 // pred_region
      %77 = dma.done [#allocation5], 1024
    $region41: #{tpu_custom_call.1} parent=1 // pred_fallthru
      _
    // Predicated region
    $region42: #{tpu_custom_call.1} parent=1 // pred_check
      _
    $region43: #{tpu_custom_call.1} parent=1 // pred_check_branch
      %79 = sbr.rel (0) target = $region45
    $region44: #{tpu_custom_call.1} parent=1 // pred_region
      %80 = dma.done [#allocation8], 1024
    $region45: #{tpu_custom_call.1} parent=1 // pred_fallthru
      _
    %v82 = vld [vmem:[#allocation2] sm:$0xf]
    %v83 = vld [vmem:[#allocation2 + $0x4] sm:$0xf]
    %v84 = vld [vmem:[#allocation2 + $0x8] sm:$0xf]
    %v85 = vld [vmem:[#allocation2 + $0xc] sm:$0xf]
    %v86 = vld [vmem:[#allocation2 + $0x10] sm:$0xf]
    %v87 = vld [vmem:[#allocation2 + $0x14] sm:$0xf]
    %v88 = vld [vmem:[#allocation2 + $0x18] sm:$0xf]
    %v89 = vld [vmem:[#allocation2 + $0x1c] sm:$0xf]
    %v90 = vld [vmem:[#allocation4] sm:$0xf]
    %v91 = vld [vmem:[#allocation4 + $0x4] sm:$0xf]
    %v92 = vld [vmem:[#allocation4 + $0x8] sm:$0xf]
    %v93 = vld [vmem:[#allocation4 + $0xc] sm:$0xf]
    %v94 = vld [vmem:[#allocation4 + $0x10] sm:$0xf]
    %v95 = vld [vmem:[#allocation4 + $0x14] sm:$0xf]
    %v96 = vld [vmem:[#allocation4 + $0x18] sm:$0xf]
    %v97 = vld [vmem:[#allocation4 + $0x1c] sm:$0xf]
    %v98 = vld [vmem:[#allocation4 + $0x20] sm:$0xf]
    %v99 = vld [vmem:[#allocation4 + $0x24] sm:$0xf]
    %v100 = vld [vmem:[#allocation4 + $0x28] sm:$0xf]
    %v101 = vld [vmem:[#allocation4 + $0x2c] sm:$0xf]
    %v102 = vld [vmem:[#allocation4 + $0x30] sm:$0xf]
    %v103 = vld [vmem:[#allocation4 + $0x34] sm:$0xf]
    %v104 = vld [vmem:[#allocation4 + $0x38] sm:$0xf]
    %v105 = vld [vmem:[#allocation4 + $0x3c] sm:$0xf]
    %v106 = vld [vmem:[%s2] sm:$0x1]
    %v108 = vlaneseq
    %v109 = vshrl.u32 %v108, 7
    %v110 = vsub.s32 0, %v109
    %v111 = vrot.slane %v106, %v110
    %v121 = vunpack.c.l.b16 %v82
    %v122 = vunpack.c.l.b16 %v83
    %v123 = vunpack.c.l.b16 %v84
    %v124 = vunpack.c.l.b16 %v85
    %v125 = vunpack.c.l.b16 %v86
    %v126 = vunpack.c.l.b16 %v87
    %v127 = vunpack.c.l.b16 %v88
    %v128 = vunpack.c.l.b16 %v89
    %v129 = vpack.c.b16 %v122, %v121
    %v130 = vpack.c.b16 %v124, %v123
    %v131 = vpack.c.b16 %v126, %v125
    %v132 = vpack.c.b16 %v128, %v127
    %v153 = vunpack.c.l.b16 %v90
    %v154 = vunpack.c.l.b16 %v91
    %v155 = vunpack.c.l.b16 %v92
    %v156 = vunpack.c.l.b16 %v93
    %v157 = vunpack.c.l.b16 %v94
    %v158 = vunpack.c.l.b16 %v95
    %v159 = vunpack.c.l.b16 %v96
    %v160 = vunpack.c.l.b16 %v97
    %v161 = vunpack.c.l.b16 %v98
    %v162 = vunpack.c.l.b16 %v99
    %v163 = vunpack.c.l.b16 %v100
    %v164 = vunpack.c.l.b16 %v101
    %v165 = vunpack.c.l.b16 %v102
    %v166 = vunpack.c.l.b16 %v103
    %v167 = vunpack.c.l.b16 %v104
    %v168 = vunpack.c.l.b16 %v105
    %v169 = vpack.c.b16 %v154, %v153
    %v170 = vpack.c.b16 %v156, %v155
    %v171 = vpack.c.b16 %v158, %v157
    %v172 = vpack.c.b16 %v160, %v159
    %v173 = vpack.c.b16 %v162, %v161
    %v174 = vpack.c.b16 %v164, %v163
    %v175 = vpack.c.b16 %v166, %v165
    %v176 = vpack.c.b16 %v168, %v167
    %185 = vmatprep.subr.bf16.mxu0 0
    %186 = vmatpush1.bf16.msra.mxu0 %v169
    %187 = vmatprep.subr.bf16.mxu0 0
    %188 = vmatpush1.bf16.msra.mxu0 %v170
    %189 = vmatprep.subr.bf16.mxu0 0
    %190 = vmatpush1.bf16.msra.mxu0 %v171
    %191 = vmatprep.subr.bf16.mxu0 0
    %192 = vmatpush1.bf16.msra.mxu0 %v172
    %193 = vmatprep.subr.bf16.mxu0 0
    %194 = vmatpush1.bf16.msra.mxu0 %v173
    %195 = vmatprep.subr.bf16.mxu0 0
    %196 = vmatpush1.bf16.msra.mxu0 %v174
    %197 = vmatprep.subr.bf16.mxu0 0
    %198 = vmatpush1.bf16.msra.mxu0 %v175
    %199 = vmatprep.subr.bf16.mxu0 0
    %200 = vmatpush1.bf16.msra.mxu0 %v176
    %201 = vmatprep.subr.bf16.mxu0 0
    %202 = vmatpush1.bf16.msra.mxu0 0
    %203 = vmatprep.subr.bf16.mxu0 0
    %204 = vmatpush1.bf16.msra.mxu0 0
    %205 = vmatprep.subr.bf16.mxu0 0
    %206 = vmatpush1.bf16.msra.mxu0 0
    %207 = vmatprep.subr.bf16.mxu0 0
    %208 = vmatpush1.bf16.msra.mxu0 0
    %209 = vmatprep.subr.bf16.mxu0 0
    %210 = vmatpush1.bf16.msra.mxu0 0
    %211 = vmatprep.subr.bf16.mxu0 0
    %212 = vmatpush1.bf16.msra.mxu0 0
    %213 = vmatprep.subr.bf16.mxu0 0
    %214 = vmatpush1.bf16.msra.mxu0 0
    %215 = vmatprep.subr.bf16.mxu0 0
    %216 = vmatpush1.bf16.msra.mxu0 0
    %217 = vmatprep.mubr.bf16.mxu0 0
    %218 = vmatmul.mubr.bf16.gmra.mrb[0].mxu0 %v129
    %v219 = vpop.f32.mrb[0].mxu0
    %v220 = vadd.f32 %v111, %v219
    %v221 = vpop.f32.mrb[0].mxu0
    %v222 = vpop.f32.mrb[0].mxu0
    %v223 = vadd.f32 %v111, %v222
    %v224 = vpop.f32.mrb[0].mxu0
    %225 = vmatprep.mubr.bf16.mxu0 0
    %226 = vmatmul.mubr.bf16.gmra.mrb[0].mxu0 %v130
    %v227 = vpop.f32.mrb[0].mxu0
    %v228 = vadd.f32 %v111, %v227
    %v229 = vpop.f32.mrb[0].mxu0
    %v230 = vpop.f32.mrb[0].mxu0
    %v231 = vadd.f32 %v111, %v230
    %v232 = vpop.f32.mrb[0].mxu0
    %233 = vmatprep.mubr.bf16.mxu0 0
    %234 = vmatmul.mubr.bf16.gmra.mrb[0].mxu0 %v131
    %v235 = vpop.f32.mrb[0].mxu0
    %v236 = vadd.f32 %v111, %v235
    %v237 = vpop.f32.mrb[0].mxu0
    %v238 = vpop.f32.mrb[0].mxu0
    %v239 = vadd.f32 %v111, %v238
    %v240 = vpop.f32.mrb[0].mxu0
    %241 = vmatprep.mubr.bf16.mxu0 0
    %242 = vmatmul.mubr.bf16.gmra.mrb[0].mxu0 %v132
    %v243 = vpop.f32.mrb[0].mxu0
    %v244 = vadd.f32 %v111, %v243
    %v245 = vpop.f32.mrb[0].mxu0
    %v246 = vpop.f32.mrb[0].mxu0
    %v247 = vadd.f32 %v111, %v246
    %v248 = vpop.f32.mrb[0].mxu0
    %249 = vdwg.mxu0
    %v250 = vmax.f32 %v220, 0.0
    %v251 = vmax.f32 %v223, 0.0
    %v252 = vmax.f32 %v228, 0.0
    %v253 = vmax.f32 %v231, 0.0
    %v254 = vmax.f32 %v236, 0.0
    %v255 = vmax.f32 %v239, 0.0
    %v256 = vmax.f32 %v244, 0.0
    %v257 = vmax.f32 %v247, 0.0
    %v258 = vpack.c.bf16 %v251, %v250
    %v259 = vpack.c.bf16 %v253, %v252
    %v260 = vpack.c.bf16 %v255, %v254
    %v261 = vpack.c.bf16 %v257, %v256
    %v262 = vld [vmem:[#allocation6] sm:$0xf]
    %v263 = vld [vmem:[#allocation6 + $0x4] sm:$0xf]
    %v264 = vld [vmem:[#allocation6 + $0x8] sm:$0xf]
    %v265 = vld [vmem:[#allocation6 + $0xc] sm:$0xf]
    %v266 = vld [vmem:[#allocation6 + $0x10] sm:$0xf]
    %v267 = vld [vmem:[#allocation6 + $0x14] sm:$0xf]
    %v268 = vld [vmem:[#allocation6 + $0x18] sm:$0xf]
    %v269 = vld [vmem:[#allocation6 + $0x1c] sm:$0xf]
    %v270 = vld [vmem:[#allocation6 + $0x20] sm:$0xf]
    %v271 = vld [vmem:[#allocation6 + $0x24] sm:$0xf]
    %v272 = vld [vmem:[#allocation6 + $0x28] sm:$0xf]
    %v273 = vld [vmem:[#allocation6 + $0x2c] sm:$0xf]
    %v274 = vld [vmem:[#allocation6 + $0x30] sm:$0xf]
    %v275 = vld [vmem:[#allocation6 + $0x34] sm:$0xf]
    %v276 = vld [vmem:[#allocation6 + $0x38] sm:$0xf]
    %v277 = vld [vmem:[#allocation6 + $0x3c] sm:$0xf]
    %v278 = vld [vmem:[%s4] sm:$0x1]
    %v280 = vlaneseq
    %v281 = vshrl.u32 %v280, 7
    %v282 = vsub.s32 0, %v281
    %v283 = vrot.slane %v278, %v282
    %v301 = vunpack.c.l.b16 %v262
    %v302 = vunpack.c.l.b16 %v263
    %v303 = vunpack.c.l.b16 %v264
    %v304 = vunpack.c.l.b16 %v265
    %v305 = vunpack.c.l.b16 %v266
    %v306 = vunpack.c.l.b16 %v267
    %v307 = vunpack.c.l.b16 %v268
    %v308 = vunpack.c.l.b16 %v269
    %v309 = vunpack.c.l.b16 %v270
    %v310 = vunpack.c.l.b16 %v271
    %v311 = vunpack.c.l.b16 %v272
    %v312 = vunpack.c.l.b16 %v273
    %v313 = vunpack.c.l.b16 %v274
    %v314 = vunpack.c.l.b16 %v275
    %v315 = vunpack.c.l.b16 %v276
    %v316 = vunpack.c.l.b16 %v277
    %v317 = vpack.c.b16 %v302, %v301
    %v318 = vpack.c.b16 %v304, %v303
    %v319 = vpack.c.b16 %v306, %v305
    %v320 = vpack.c.b16 %v308, %v307
    %v321 = vpack.c.b16 %v310, %v309
    %v322 = vpack.c.b16 %v312, %v311
    %v323 = vpack.c.b16 %v314, %v313
    %v324 = vpack.c.b16 %v316, %v315
    %333 = vmatprep.subr.bf16.mxu0 0
    %334 = vmatpush1.bf16.msra.mxu0 %v317
    %335 = vmatprep.subr.bf16.mxu0 0
    %336 = vmatpush1.bf16.msra.mxu0 %v318
    %337 = vmatprep.subr.bf16.mxu0 0
    %338 = vmatpush1.bf16.msra.mxu0 %v319
    %339 = vmatprep.subr.bf16.mxu0 0
    %340 = vmatpush1.bf16.msra.mxu0 %v320
    %341 = vmatprep.subr.bf16.mxu0 0
    %342 = vmatpush1.bf16.msra.mxu0 %v321
    %343 = vmatprep.subr.bf16.mxu0 0
    %344 = vmatpush1.bf16.msra.mxu0 %v322
    %345 = vmatprep.subr.bf16.mxu0 0
    %346 = vmatpush1.bf16.msra.mxu0 %v323
    %347 = vmatprep.subr.bf16.mxu0 0
    %348 = vmatpush1.bf16.msra.mxu0 %v324
    %349 = vmatprep.subr.bf16.mxu0 0
    %350 = vmatpush1.bf16.msra.mxu0 0
    %351 = vmatprep.subr.bf16.mxu0 0
    %352 = vmatpush1.bf16.msra.mxu0 0
    %353 = vmatprep.subr.bf16.mxu0 0
    %354 = vmatpush1.bf16.msra.mxu0 0
    %355 = vmatprep.subr.bf16.mxu0 0
    %356 = vmatpush1.bf16.msra.mxu0 0
    %357 = vmatprep.subr.bf16.mxu0 0
    %358 = vmatpush1.bf16.msra.mxu0 0
    %359 = vmatprep.subr.bf16.mxu0 0
    %360 = vmatpush1.bf16.msra.mxu0 0
    %361 = vmatprep.subr.bf16.mxu0 0
    %362 = vmatpush1.bf16.msra.mxu0 0
    %363 = vmatprep.subr.bf16.mxu0 0
    %364 = vmatpush1.bf16.msra.mxu0 0
    %365 = vmatprep.mubr.bf16.mxu0 0
    %366 = vmatmul.mubr.bf16.gmra.mrb[0].mxu0 %v258
    %v367 = vpop.f32.mrb[0].mxu0
    %v368 = vadd.f32 %v283, %v367
    %v369 = vpop.f32.mrb[0].mxu0
    %v370 = vpop.f32.mrb[0].mxu0
    %v371 = vadd.f32 %v283, %v370
    %v372 = vpop.f32.mrb[0].mxu0
    %373 = vmatprep.mubr.bf16.mxu0 0
    %374 = vmatmul.mubr.bf16.gmra.mrb[0].mxu0 %v259
    %v375 = vpop.f32.mrb[0].mxu0
    %v376 = vadd.f32 %v283, %v375
    %v377 = vpop.f32.mrb[0].mxu0
    %v378 = vpop.f32.mrb[0].mxu0
    %v379 = vadd.f32 %v283, %v378
    %v380 = vpop.f32.mrb[0].mxu0
    %381 = vmatprep.mubr.bf16.mxu0 0
    %382 = vmatmul.mubr.bf16.gmra.mrb[0].mxu0 %v260
    %v383 = vpop.f32.mrb[0].mxu0
    %v384 = vadd.f32 %v283, %v383
    %v385 = vpop.f32.mrb[0].mxu0
    %v386 = vpop.f32.mrb[0].mxu0
    %v387 = vadd.f32 %v283, %v386
    %v388 = vpop.f32.mrb[0].mxu0
    %389 = vmatprep.mubr.bf16.mxu0 0
    %390 = vmatmul.mubr.bf16.gmra.mrb[0].mxu0 %v261
    %v391 = vpop.f32.mrb[0].mxu0
    %v392 = vadd.f32 %v283, %v391
    %v393 = vpop.f32.mrb[0].mxu0
    %v394 = vpop.f32.mrb[0].mxu0
    %v395 = vadd.f32 %v283, %v394
    %v396 = vpop.f32.mrb[0].mxu0
    %397 = vdwg.mxu0
    %v398 = vmax.f32 %v368, 0.0
    %v399 = vmax.f32 %v371, 0.0
    %v400 = vmax.f32 %v376, 0.0
    %v401 = vmax.f32 %v379, 0.0
    %v402 = vmax.f32 %v384, 0.0
    %v403 = vmax.f32 %v387, 0.0
    %v404 = vmax.f32 %v392, 0.0
    %v405 = vmax.f32 %v395, 0.0
    %v406 = vpack.c.bf16 %v399, %v398
    %v407 = vpack.c.bf16 %v401, %v400
    %v408 = vpack.c.bf16 %v403, %v402
    %v409 = vpack.c.bf16 %v405, %v404
    %v410 = vld [vmem:[#allocation7] sm:$0xf]
    %v411 = vld [vmem:[#allocation7 + $0x4] sm:$0xf]
    %v412 = vld [vmem:[#allocation7 + $0x8] sm:$0xf]
    %v413 = vld [vmem:[#allocation7 + $0xc] sm:$0xf]
    %v414 = vld [vmem:[#allocation7 + $0x10] sm:$0xf]
    %v415 = vld [vmem:[#allocation7 + $0x14] sm:$0xf]
    %v416 = vld [vmem:[#allocation7 + $0x18] sm:$0xf]
    %v417 = vld [vmem:[#allocation7 + $0x1c] sm:$0xf]
    %v418 = vld [vmem:[#allocation7 + $0x20] sm:$0xf]
    %v419 = vld [vmem:[#allocation7 + $0x24] sm:$0xf]
    %v420 = vld [vmem:[#allocation7 + $0x28] sm:$0xf]
    %v421 = vld [vmem:[#allocation7 + $0x2c] sm:$0xf]
    %v422 = vld [vmem:[#allocation7 + $0x30] sm:$0xf]
    %v423 = vld [vmem:[#allocation7 + $0x34] sm:$0xf]
    %v424 = vld [vmem:[#allocation7 + $0x38] sm:$0xf]
    %v425 = vld [vmem:[#allocation7 + $0x3c] sm:$0xf]
    %v426 = vld [vmem:[%s6] sm:$0x1]
    %v428 = vlaneseq
    %v429 = vshrl.u32 %v428, 7
    %v430 = vsub.s32 0, %v429
    %v431 = vrot.slane %v426, %v430
    %v449 = vunpack.c.l.b16 %v410
    %v450 = vunpack.c.l.b16 %v411
    %v451 = vunpack.c.l.b16 %v412
    %v452 = vunpack.c.l.b16 %v413
    %v453 = vunpack.c.l.b16 %v414
    %v454 = vunpack.c.l.b16 %v415
    %v455 = vunpack.c.l.b16 %v416
    %v456 = vunpack.c.l.b16 %v417
    %v457 = vunpack.c.l.b16 %v418
    %v458 = vunpack.c.l.b16 %v419
    %v459 = vunpack.c.l.b16 %v420
    %v460 = vunpack.c.l.b16 %v421
    %v461 = vunpack.c.l.b16 %v422
    %v462 = vunpack.c.l.b16 %v423
    %v463 = vunpack.c.l.b16 %v424
    %v464 = vunpack.c.l.b16 %v425
    %v465 = vpack.c.b16 %v450, %v449
    %v466 = vpack.c.b16 %v452, %v451
    %v467 = vpack.c.b16 %v454, %v453
    %v468 = vpack.c.b16 %v456, %v455
    %v469 = vpack.c.b16 %v458, %v457
    %v470 = vpack.c.b16 %v460, %v459
    %v471 = vpack.c.b16 %v462, %v461
    %v472 = vpack.c.b16 %v464, %v463
    %481 = vmatprep.subr.bf16.mxu0 0
    %482 = vmatpush1.bf16.msra.mxu0 %v465
    %483 = vmatprep.subr.bf16.mxu0 0
    %484 = vmatpush1.bf16.msra.mxu0 %v466
    %485 = vmatprep.subr.bf16.mxu0 0
    %486 = vmatpush1.bf16.msra.mxu0 %v467
    %487 = vmatprep.subr.bf16.mxu0 0
    %488 = vmatpush1.bf16.msra.mxu0 %v468
    %489 = vmatprep.subr.bf16.mxu0 0
    %490 = vmatpush1.bf16.msra.mxu0 %v469
    %491 = vmatprep.subr.bf16.mxu0 0
    %492 = vmatpush1.bf16.msra.mxu0 %v470
    %493 = vmatprep.subr.bf16.mxu0 0
    %494 = vmatpush1.bf16.msra.mxu0 %v471
    %495 = vmatprep.subr.bf16.mxu0 0
    %496 = vmatpush1.bf16.msra.mxu0 %v472
    %497 = vmatprep.subr.bf16.mxu0 0
    %498 = vmatpush1.bf16.msra.mxu0 0
    %499 = vmatprep.subr.bf16.mxu0 0
    %500 = vmatpush1.bf16.msra.mxu0 0
    %501 = vmatprep.subr.bf16.mxu0 0
    %502 = vmatpush1.bf16.msra.mxu0 0
    %503 = vmatprep.subr.bf16.mxu0 0
    %504 = vmatpush1.bf16.msra.mxu0 0
    %505 = vmatprep.subr.bf16.mxu0 0
    %506 = vmatpush1.bf16.msra.mxu0 0
    %507 = vmatprep.subr.bf16.mxu0 0
    %508 = vmatpush1.bf16.msra.mxu0 0
    %509 = vmatprep.subr.bf16.mxu0 0
    %510 = vmatpush1.bf16.msra.mxu0 0
    %511 = vmatprep.subr.bf16.mxu0 0
    %512 = vmatpush1.bf16.msra.mxu0 0
    %513 = vmatprep.mubr.bf16.mxu0 0
    %514 = vmatmul.mubr.bf16.gmra.mrb[0].mxu0 %v406
    %v515 = vpop.f32.mrb[0].mxu0
    %v516 = vadd.f32 %v431, %v515
    %v517 = vpop.f32.mrb[0].mxu0
    %v518 = vpop.f32.mrb[0].mxu0
    %v519 = vadd.f32 %v431, %v518
    %v520 = vpop.f32.mrb[0].mxu0
    %521 = vmatprep.mubr.bf16.mxu0 0
    %522 = vmatmul.mubr.bf16.gmra.mrb[0].mxu0 %v407
    %v523 = vpop.f32.mrb[0].mxu0
    %v524 = vadd.f32 %v431, %v523
    %v525 = vpop.f32.mrb[0].mxu0
    %v526 = vpop.f32.mrb[0].mxu0
    %v527 = vadd.f32 %v431, %v526
    %v528 = vpop.f32.mrb[0].mxu0
    %529 = vmatprep.mubr.bf16.mxu0 0
    %530 = vmatmul.mubr.bf16.gmra.mrb[0].mxu0 %v408
    %v531 = vpop.f32.mrb[0].mxu0
    %v532 = vadd.f32 %v431, %v531
    %v533 = vpop.f32.mrb[0].mxu0
    %v534 = vpop.f32.mrb[0].mxu0
    %v535 = vadd.f32 %v431, %v534
    %v536 = vpop.f32.mrb[0].mxu0
    %537 = vmatprep.mubr.bf16.mxu0 0
    %538 = vmatmul.mubr.bf16.gmra.mrb[0].mxu0 %v409
    %v539 = vpop.f32.mrb[0].mxu0
    %v540 = vadd.f32 %v431, %v539
    %v541 = vpop.f32.mrb[0].mxu0
    %v542 = vpop.f32.mrb[0].mxu0
    %v543 = vadd.f32 %v431, %v542
    %v544 = vpop.f32.mrb[0].mxu0
    %545 = vdwg.mxu0
    %546 = vmax.xlane.f32.xlu0 %v516
    %v547 = vpop.xlane.xlu0 %546
    %548 = vmax.xlane.f32.xlu0 %v519
    %v549 = vpop.xlane.xlu0 %548
    %550 = vmax.xlane.f32.xlu0 %v524
    %v551 = vpop.xlane.xlu0 %550
    %552 = vmax.xlane.f32.xlu0 %v527
    %v553 = vpop.xlane.xlu0 %552
    %554 = vmax.xlane.f32.xlu0 %v532
    %v555 = vpop.xlane.xlu0 %554
    %556 = vmax.xlane.f32.xlu0 %v535
    %v557 = vpop.xlane.xlu0 %556
    %558 = vmax.xlane.f32.xlu0 %v540
    %v559 = vpop.xlane.xlu0 %558
    %560 = vmax.xlane.f32.xlu0 %v543
    %v561 = vpop.xlane.xlu0 %560
    %v562 = vsub.f32 %v516, %v547
    %v563 = vsub.f32 %v519, %v549
    %v564 = vsub.f32 %v524, %v551
    %v565 = vsub.f32 %v527, %v553
    %v566 = vsub.f32 %v532, %v555
    %v567 = vsub.f32 %v535, %v557
    %v568 = vsub.f32 %v540, %v559
    %v569 = vsub.f32 %v543, %v561
    %v570 = vmul.f32 %v562, 1.442695
    %v571 = vpow.pop %v570
    %v572 = vmul.f32 %v563, 1.442695
    %v573 = vpow.pop %v572
    %v574 = vmul.f32 %v564, 1.442695
    %v575 = vpow.pop %v574
    %v576 = vmul.f32 %v565, 1.442695
    %v577 = vpow.pop %v576
    %v578 = vmul.f32 %v566, 1.442695
    %v579 = vpow.pop %v578
    %v580 = vmul.f32 %v567, 1.442695
    %v581 = vpow.pop %v580
    %v582 = vmul.f32 %v568, 1.442695
    %v583 = vpow.pop %v582
    %v584 = vmul.f32 %v569, 1.442695
    %v585 = vpow.pop %v584
    %586 = vadd.xlane.f32.xlu0 %v571
    %v587 = vpop.xlane.xlu0 %586
    %588 = vadd.xlane.f32.xlu0 %v573
    %v589 = vpop.xlane.xlu0 %588
    %590 = vadd.xlane.f32.xlu0 %v575
    %v591 = vpop.xlane.xlu0 %590
    %592 = vadd.xlane.f32.xlu0 %v577
    %v593 = vpop.xlane.xlu0 %592
    %594 = vadd.xlane.f32.xlu0 %v579
    %v595 = vpop.xlane.xlu0 %594
    %596 = vadd.xlane.f32.xlu0 %v581
    %v597 = vpop.xlane.xlu0 %596
    %598 = vadd.xlane.f32.xlu0 %v583
    %v599 = vpop.xlane.xlu0 %598
    %600 = vadd.xlane.f32.xlu0 %v585
    %v601 = vpop.xlane.xlu0 %600
    %v602 = vrcp.pop %v587
    %v603 = vmul.f32 %v571, %v602
    %v604 = vrcp.pop %v589
    %v605 = vmul.f32 %v573, %v604
    %v606 = vrcp.pop %v591
    %v607 = vmul.f32 %v575, %v606
    %v608 = vrcp.pop %v593
    %v609 = vmul.f32 %v577, %v608
    %v610 = vrcp.pop %v595
    %v611 = vmul.f32 %v579, %v610
    %v612 = vrcp.pop %v597
    %v613 = vmul.f32 %v581, %v612
    %v614 = vrcp.pop %v599
    %v615 = vmul.f32 %v583, %v614
    %v616 = vrcp.pop %v601
    %v617 = vmul.f32 %v585, %v616
    %vm618 = vcmask 130048
    %619 = vst.msk [vmem:[%s7] sm:$0xff] %vm618, %v603
    %620 = vst.msk [vmem:[%s7 + $0x8] sm:$0xff] %vm618, %v605
    %621 = vst.msk [vmem:[%s7 + $0x10] sm:$0xff] %vm618, %v607
    %622 = vst.msk [vmem:[%s7 + $0x18] sm:$0xff] %vm618, %v609
    %623 = vst.msk [vmem:[%s7 + $0x20] sm:$0xff] %vm618, %v611
    %624 = vst.msk [vmem:[%s7 + $0x28] sm:$0xff] %vm618, %v613
    %625 = vst.msk [vmem:[%s7 + $0x30] sm:$0xff] %vm618, %v615
    %626 = vst.msk [vmem:[%s7 + $0x38] sm:$0xff] %vm618, %v617
    // Predicated region
    $region46: #{tpu_custom_call.1} parent=1 // pred_check
      _
    $region47: #{tpu_custom_call.1} parent=1 // pred_check_branch
      %628 = sbr.rel (0) target = $region49
    $region48: #{tpu_custom_call.1} parent=1 // pred_region
      _
    $region49: #{tpu_custom_call.1} parent=1 // pred_fallthru
      _
    // Predicated region
    $region50: #{tpu_custom_call.1} parent=1 // pred_check
      _
    $region51: #{tpu_custom_call.1} parent=1 // pred_check_branch
      %630 = sbr.rel (0) target = $region53
    $region52: #{tpu_custom_call.1} parent=1 // pred_region
      _
    $region53: #{tpu_custom_call.1} parent=1 // pred_fallthru
      _
    %631 = vsyncpa [#allocation3], 1
    %632 = vsyncpa [#allocation5], 1
    %633 = vsyncpa [#allocation8], 1

</llo_original>
